<compile_context>
chip_gen: v6e
topology: v6e:2x2x1
jax: 0.10.0
libtpu: 0.0.40
codegen_flags: <defaults>
</compile_context>

<pallas_src>
import functools
import math

import jax
import jax.numpy as jnp
from jax.experimental import pallas as pl
from jax.experimental.pallas import tpu as pltpu


# ------------------------------ Shared step math -----------------------------

def _lstm_step_math(x, wih_ref, whh_ref, b_ref, fc_w_ref, fc_b_ref,
                    h_read_ref, c_read_ref, h_write_ref, c_write_ref,
                    num_inputs):
    """One LSTM timestep over all layers + fc + sigmoid.

    x           : [B, num_inputs]   this step's input (already loaded)
    wih_ref     : [L, in_max, 4H]   input->gate weights (i,f,g,o lane order)
    whh_ref     : [L, H, 4H]        hidden->gate weights
    b_ref       : [L, 1, 4H]        pre-folded bias (b_ih + b_hh)
    fc_w_ref    : [H, O]            fc weight (pre-transposed)
    fc_b_ref    : [1, O]            fc bias
    h_read_ref  : [L, B, H]         previous hidden state (read)
    c_read_ref  : [L, B, H]         previous cell state (read)
    h_write_ref : [L, B, H]         new hidden state (written per layer)
    c_write_ref : [L, B, H]         new cell state (written per layer)
    (read and write refs may be the same ref — sequence carry case.)
    Returns y = sigmoid(fc(h_top))  : [B, O]
    """
    num_layers, _, H = h_read_ref.shape

    # Hoisted recurrent dots: all L are independent of the layer recurrence,
    # so the MXU can pipeline them back-to-back before layer 0's gate math.
    pre_hh = [jnp.dot(h_read_ref[l], whh_ref[l],
                      preferred_element_type=jnp.float32) + b_ref[l]
              for l in range(num_layers)]

    layer_in = x
    in_rows = num_inputs
    for l in range(num_layers):                         # static unroll, L small
        # Single MXU dot on the critical path per layer (layer-0 weight rows
        # statically sliced, so no input padding is needed).
        pre = jnp.dot(layer_in, wih_ref[l, :in_rows, :],
                      preferred_element_type=jnp.float32) + pre_hh[l]

        # One sigmoid + one tanh over the full 4H-wide pre-activation,
        # gates taken as static slices (i, f, g, o).
        sig = jax.nn.sigmoid(pre)
        tnh = jnp.tanh(pre)
        i_g = sig[:, 0 * H:1 * H]
        f_g = sig[:, 1 * H:2 * H]
        g_g = tnh[:, 2 * H:3 * H]
        o_g = sig[:, 3 * H:4 * H]

        c_new = f_g * c_read_ref[l] + i_g * g_g
        h_new = o_g * jnp.tanh(c_new)

        h_write_ref[l] = h_new
        c_write_ref[l] = c_new

        layer_in = h_new
        in_rows = H

    return jax.nn.sigmoid(
        jnp.dot(layer_in, fc_w_ref[...], preferred_element_type=jnp.float32)
        + fc_b_ref[...])


# ------------------------------- Pallas kernels ------------------------------

def _lstm_step_kernel(x_ref, h_prev_ref, c_prev_ref,
                      wih_ref, whh_ref, b_ref, fc_w_ref, fc_b_ref,
                      y_ref, h_out_ref, c_out_ref, *, num_inputs):
    """Single-timestep fused kernel (mirrors the module's forward())."""
    y_ref[...] = _lstm_step_math(x_ref[...], wih_ref, whh_ref, b_ref,
                                 fc_w_ref, fc_b_ref,
                                 h_prev_ref, c_prev_ref,
                                 h_out_ref, c_out_ref, num_inputs)


def _lstm_seq_kernel(x_ref, h0_ref, c0_ref,
                     wih_ref, whh_ref, b_ref, fc_w_ref, fc_b_ref,
                     y_ref, h_out_ref, c_out_ref, *, num_inputs):
    """T-step fused kernel: grid=(T,), weights VMEM-resident, state carried in
    the resident h_out/c_out output blocks across grid steps."""
    @pl.when(pl.program_id(0) == 0)
    def _():
        h_out_ref[...] = h0_ref[...]
        c_out_ref[...] = c0_ref[...]

    # Read and write the SAME resident state block (carry across steps).
    y_ref[0] = _lstm_step_math(x_ref[0], wih_ref, whh_ref, b_ref,
                               fc_w_ref, fc_b_ref,
                               h_out_ref, c_out_ref,
                               h_out_ref, c_out_ref, num_inputs)


def _vmem_spec():
    return pl.BlockSpec(memory_space=pltpu.MemorySpace.VMEM)


# --------------------------------- Wrappers ----------------------------------

def lstm_forward_fused(params, x, prev_state):
    """Equivalent of LSTM.forward(x): one fused pallas_call for one step.
    Returns (output [B, num_outputs], (h_new, c_new))."""
    h_prev, c_prev = prev_state
    L, B, H = h_prev.shape
    num_inputs = x.shape[1]
    O = params["fc_w"].shape[1]

    kernel = functools.partial(_lstm_step_kernel, num_inputs=num_inputs)
    y, h_new, c_new = pl.pallas_call(
        kernel,
        out_shape=(jax.ShapeDtypeStruct((B, O), jnp.float32),
                   jax.ShapeDtypeStruct((L, B, H), jnp.float32),
                   jax.ShapeDtypeStruct((L, B, H), jnp.float32)),
        in_specs=[_vmem_spec()] * 8,
        out_specs=(_vmem_spec(), _vmem_spec(), _vmem_spec()),
        # h_prev -> h_out, c_prev -> c_out reuse the same HBM buffers (P8).
        input_output_aliases={1: 1, 2: 2},
    )(x, h_prev, c_prev,
      params["wih"], params["whh"], params["b"],
      params["fc_w"], params["fc_b"])
    return y, (h_new, c_new)


def lstm_forward_sequence(params, x_seq, prev_state):
    """Apply the module's forward() over a whole sequence in ONE pallas_call.
    x_seq: [T, B, num_inputs].  Returns (y_seq [T, B, O], (h_T, c_T))."""
    h0, c0 = prev_state
    L, B, H = h0.shape
    T, _, num_inputs = x_seq.shape
    in_max = params["wih"].shape[1]
    O = params["fc_w"].shape[1]
    G = 4 * H

    kernel = functools.partial(_lstm_seq_kernel, num_inputs=num_inputs)
    y_seq, h_fin, c_fin = pl.pallas_call(
        kernel,
        out_shape=(jax.ShapeDtypeStruct((T, B, O), jnp.float32),
                   jax.ShapeDtypeStruct((L, B, H), jnp.float32),
                   jax.ShapeDtypeStruct((L, B, H), jnp.float32)),
        grid=(T,),
        in_specs=[
            pl.BlockSpec((1, B, num_inputs), lambda t: (t, 0, 0)),  # x (stream)
            pl.BlockSpec((L, B, H), lambda t: (0, 0, 0)),           # h0 (once)
            pl.BlockSpec((L, B, H), lambda t: (0, 0, 0)),           # c0 (once)
            pl.BlockSpec((L, in_max, G), lambda t: (0, 0, 0)),      # wih resident
            pl.BlockSpec((L, H, G), lambda t: (0, 0, 0)),           # whh resident
            pl.BlockSpec((L, 1, G), lambda t: (0, 0, 0)),           # bias resident
            pl.BlockSpec((H, O), lambda t: (0, 0)),                 # fc_w resident
            pl.BlockSpec((1, O), lambda t: (0, 0)),                 # fc_b resident
        ],
        out_specs=(
            pl.BlockSpec((1, B, O), lambda t: (t, 0, 0)),           # y (stream)
            pl.BlockSpec((L, B, H), lambda t: (0, 0, 0)),           # h carry/out
            pl.BlockSpec((L, B, H), lambda t: (0, 0, 0)),           # c carry/out
        ),
        input_output_aliases={1: 1, 2: 2},
        compiler_params=pltpu.CompilerParams(
            dimension_semantics=("arbitrary",)),
    )(x_seq, h0, c0,
      params["wih"], params["whh"], params["b"],
      params["fc_w"], params["fc_b"])
    return y_seq, (h_fin, c_fin)


# --------------------------- Parameter construction --------------------------

def init_lstm_params(key, num_inputs, num_outputs, num_hid, num_layers):
    """Mirror LSTM.__init__ + reset_parameters (deterministic, synthetic).

    Fused layout: per layer wih [in_max, 4H], whh [H, 4H], bias [1, 4H] with
    the 4H axis in PyTorch gate order (i, f, g, o).  If real checkpoints are
    ever loaded, keep that ordering and fold b = b_ih + b_hh.
    """
    stdev = 5.0 / math.sqrt(num_inputs + num_outputs)
    in_max = max(num_inputs, num_hid)

    wih_list, whh_list = [], []
    for layer in range(num_layers):
        in_dim = num_inputs if layer == 0 else num_hid
        key, k1, k2 = jax.random.split(key, 3)
        # PyTorch stores weight_ih_l{k} as [4H, in] with row blocks (i,f,g,o);
        # transpose -> [in, 4H] column blocks (i,f,g,o), zero-pad rows to in_max.
        w_ih = jax.random.uniform(k1, (4 * num_hid, in_dim), jnp.float32,
                                  -stdev, stdev)
        w_hh = jax.random.uniform(k2, (4 * num_hid, num_hid), jnp.float32,
                                  -stdev, stdev)
        wih = jnp.zeros((in_max, 4 * num_hid), jnp.float32).at[:in_dim].set(w_ih.T)
        wih_list.append(wih)
        whh_list.append(w_hh.T)

    key, k3, k4, k5 = jax.random.split(key, 4)
    w_fc = jax.random.uniform(k3, (num_outputs, num_hid), jnp.float32,
                              -stdev, stdev)
    params = {
        "wih": jnp.stack(wih_list, 0),                       # [L, in_max, 4H]
        "whh": jnp.stack(whh_list, 0),                       # [L, H, 4H]
        # biases are zero-initialized in reset_parameters; b_ih + b_hh = 0
        "b": jnp.zeros((num_layers, 1, 4 * num_hid), jnp.float32),
        "fc_w": w_fc.T,                                      # [H, O]
        "fc_b": jnp.zeros((1, num_outputs), jnp.float32),
        # lstm_h_bias / lstm_c_bias = randn(num_layers, 1, num_hid) * 0.05
        "h_bias": jax.random.normal(k4, (num_layers, 1, num_hid)) * 0.05,
        "c_bias": jax.random.normal(k5, (num_layers, 1, num_hid)) * 0.05,
    }
    return params


def create_new_state(params, batch_size):
    h0 = jnp.tile(params["h_bias"], (1, batch_size, 1))      # [L, B, H]
    c0 = jnp.tile(params["c_bias"], (1, batch_size, 1))      # [L, B, H]
    return h0, c0


# ----------------------------- Pure-JAX reference ----------------------------

def lstm_forward_ref(params, x, prev_state, num_inputs):
    h_prev, c_prev = prev_state
    L, B, H = h_prev.shape
    layer_in = x
    h_news, c_news = [], []
    for l in range(L):
        in_dim = num_inputs if l == 0 else H
        wih = params["wih"][l][:in_dim]
        pre = layer_in @ wih + h_prev[l] @ params["whh"][l] + params["b"][l]
        i = jax.nn.sigmoid(pre[:, 0:H])
        f = jax.nn.sigmoid(pre[:, H:2 * H])
        g = jnp.tanh(pre[:, 2 * H:3 * H])
        o = jax.nn.sigmoid(pre[:, 3 * H:4 * H])
        c_new = f * c_prev[l] + i * g
        h_new = o * jnp.tanh(c_new)
        h_news.append(h_new)
        c_news.append(c_new)
        layer_in = h_new
    y = jax.nn.sigmoid(layer_in @ params["fc_w"] + params["fc_b"])
    return y, (jnp.stack(h_news, 0), jnp.stack(c_news, 0))


def lstm_sequence_ref(params, x_seq, prev_state, num_inputs):
    state = prev_state
    ys = []
    for t in range(x_seq.shape[0]):
        y, state = lstm_forward_ref(params, x_seq[t], state, num_inputs)
        ys.append(y)
    return jnp.stack(ys, 0), state


# ----------------------------------- Main ------------------------------------

if __name__ == "__main__":
    num_inputs, num_outputs, num_hid, num_layers = 8, 8, 32, 2
    batch, seq_len = 2, 8

    key = jax.random.PRNGKey(0)
    pkey, xkey, skey = jax.random.split(key, 3)
    params = init_lstm_params(pkey, num_inputs, num_outputs, num_hid,
                              num_layers)

    x = jax.random.normal(xkey, (batch, num_inputs), jnp.float32)
    x_seq = jax.random.normal(skey, (seq_len, batch, num_inputs), jnp.float32)
    prev_state = create_new_state(params, batch)

    # ---- single-step fused kernel (module's forward()) ----
    step_fwd = jax.jit(lstm_forward_fused)
    out, (h_new, c_new) = step_fwd(params, x, prev_state)
    jax.block_until_ready((out, h_new, c_new))

    assert out.shape == (batch, num_outputs)
    assert h_new.shape == (num_layers, batch, num_hid)
    assert c_new.shape == (num_layers, batch, num_hid)

    ref_out, (ref_h, ref_c) = lstm_forward_ref(params, x, prev_state,
                                               num_inputs)
    assert jnp.allclose(out, ref_out, atol=1e-3, rtol=1e-3)
    assert jnp.allclose(h_new, ref_h, atol=1e-3, rtol=1e-3)
    assert jnp.allclose(c_new, ref_c, atol=1e-3, rtol=1e-3)

    # ---- sequence-fused kernel (forward() applied T times, one pallas_call) ----
    seq_fwd = jax.jit(lstm_forward_sequence)
    y_seq, (h_fin, c_fin) = seq_fwd(params, x_seq, prev_state)
    jax.block_until_ready((y_seq, h_fin, c_fin))

    assert y_seq.shape == (seq_len, batch, num_outputs)
    assert h_fin.shape == (num_layers, batch, num_hid)
    assert c_fin.shape == (num_layers, batch, num_hid)

    ref_y_seq, (ref_h_fin, ref_c_fin) = lstm_sequence_ref(
        params, x_seq, prev_state, num_inputs)
    assert jnp.allclose(y_seq, ref_y_seq, atol=2e-3, rtol=2e-3)
    assert jnp.allclose(h_fin, ref_h_fin, atol=2e-3, rtol=2e-3)
    assert jnp.allclose(c_fin, ref_c_fin, atol=2e-3, rtol=2e-3)

    print("KERNEL_OK")
</pallas_src>

<mosaic_0001>
module attributes {stable_mosaic.version = 11 : i64} {
  func.func @_lstm_step_kernel(%arg0: memref<2x8xf32, #tpu.memory_space<vmem>>, %arg1: memref<2x2x32xf32, #tpu.memory_space<vmem>>, %arg2: memref<2x2x32xf32, #tpu.memory_space<vmem>>, %arg3: memref<2x32x128xf32, #tpu.memory_space<vmem>>, %arg4: memref<2x32x128xf32, #tpu.memory_space<vmem>>, %arg5: memref<2x1x128xf32, #tpu.memory_space<vmem>>, %arg6: memref<32x8xf32, #tpu.memory_space<vmem>>, %arg7: memref<1x8xf32, #tpu.memory_space<vmem>>, %arg8: memref<2x8xf32, #tpu.memory_space<vmem>>, %arg9: memref<2x2x32xf32, #tpu.memory_space<vmem>>, %arg10: memref<2x2x32xf32, #tpu.memory_space<vmem>>) attributes {dimension_semantics = [], scalar_prefetch = 0 : i64, scratch_operands = 0 : i64, tpu.core_type = #tpu.core_type<tc>} {
    %c0 = arith.constant 0 : index
    %c0_0 = arith.constant 0 : index
    %0 = vector.load %arg0[%c0, %c0_0] : memref<2x8xf32, #tpu.memory_space<vmem>>, vector<2x8xf32>
    %c0_1 = arith.constant 0 : index
    %c0_2 = arith.constant 0 : index
    %c0_3 = arith.constant 0 : index
    %1 = vector.load %arg1[%c0_1, %c0_2, %c0_3] : memref<2x2x32xf32, #tpu.memory_space<vmem>>, vector<1x2x32xf32>
    %2 = vector.shape_cast %1 : vector<1x2x32xf32> to vector<2x32xf32>
    %c0_4 = arith.constant 0 : index
    %c0_5 = arith.constant 0 : index
    %c0_6 = arith.constant 0 : index
    %3 = vector.load %arg4[%c0_4, %c0_5, %c0_6] : memref<2x32x128xf32, #tpu.memory_space<vmem>>, vector<1x32x128xf32>
    %4 = vector.shape_cast %3 : vector<1x32x128xf32> to vector<32x128xf32>
    %cst = arith.constant dense<0.000000e+00> : vector<2x128xf32>
    %5 = tpu.matmul %2, %4, %cst {dimension_numbers = #tpu.dot_dimension_numbers<[1], [0], [0], [1], [0, 0, 1, 1], [], []>} : vector<2x32xf32>, vector<32x128xf32>, vector<2x128xf32> -> vector<2x128xf32>
    %c0_7 = arith.constant 0 : index
    %c0_8 = arith.constant 0 : index
    %c0_9 = arith.constant 0 : index
    %6 = vector.load %arg5[%c0_7, %c0_8, %c0_9] : memref<2x1x128xf32, #tpu.memory_space<vmem>>, vector<1x1x128xf32>
    %7 = vector.shape_cast %6 : vector<1x1x128xf32> to vector<1x128xf32>
    %8 = vector.broadcast %7 : vector<1x128xf32> to vector<2x128xf32>
    %9 = arith.addf %5, %8 : vector<2x128xf32>
    %c1 = arith.constant 1 : index
    %c0_10 = arith.constant 0 : index
    %c0_11 = arith.constant 0 : index
    %10 = vector.load %arg1[%c1, %c0_10, %c0_11] : memref<2x2x32xf32, #tpu.memory_space<vmem>>, vector<1x2x32xf32>
    %11 = vector.shape_cast %10 : vector<1x2x32xf32> to vector<2x32xf32>
    %c1_12 = arith.constant 1 : index
    %c0_13 = arith.constant 0 : index
    %c0_14 = arith.constant 0 : index
    %12 = vector.load %arg4[%c1_12, %c0_13, %c0_14] : memref<2x32x128xf32, #tpu.memory_space<vmem>>, vector<1x32x128xf32>
    %13 = vector.shape_cast %12 : vector<1x32x128xf32> to vector<32x128xf32>
    %cst_15 = arith.constant dense<0.000000e+00> : vector<2x128xf32>
    %14 = tpu.matmul %11, %13, %cst_15 {dimension_numbers = #tpu.dot_dimension_numbers<[1], [0], [0], [1], [0, 0, 1, 1], [], []>} : vector<2x32xf32>, vector<32x128xf32>, vector<2x128xf32> -> vector<2x128xf32>
    %c1_16 = arith.constant 1 : index
    %c0_17 = arith.constant 0 : index
    %c0_18 = arith.constant 0 : index
    %15 = vector.load %arg5[%c1_16, %c0_17, %c0_18] : memref<2x1x128xf32, #tpu.memory_space<vmem>>, vector<1x1x128xf32>
    %16 = vector.shape_cast %15 : vector<1x1x128xf32> to vector<1x128xf32>
    %17 = vector.broadcast %16 : vector<1x128xf32> to vector<2x128xf32>
    %18 = arith.addf %14, %17 : vector<2x128xf32>
    %c0_19 = arith.constant 0 : index
    %c0_20 = arith.constant 0 : index
    %c0_21 = arith.constant 0 : index
    %19 = vector.load %arg3[%c0_19, %c0_20, %c0_21] : memref<2x32x128xf32, #tpu.memory_space<vmem>>, vector<1x8x128xf32>
    %20 = vector.shape_cast %19 : vector<1x8x128xf32> to vector<8x128xf32>
    %cst_22 = arith.constant dense<0.000000e+00> : vector<2x128xf32>
    %21 = tpu.matmul %0, %20, %cst_22 {dimension_numbers = #tpu.dot_dimension_numbers<[1], [0], [0], [1], [0, 0, 1, 1], [], []>} : vector<2x8xf32>, vector<8x128xf32>, vector<2x128xf32> -> vector<2x128xf32>
    %22 = arith.addf %21, %9 : vector<2x128xf32>
    %23 = arith.negf %22 : vector<2x128xf32>
    %24 = math.exp %23 : vector<2x128xf32>
    %cst_23 = arith.constant 1.000000e+00 : f32
    %25 = vector.broadcast %cst_23 : f32 to vector<2x128xf32>
    %26 = arith.addf %25, %24 : vector<2x128xf32>
    %27 = arith.divf %25, %26 : vector<2x128xf32>
    %28 = math.tanh %22 : vector<2x128xf32>
    %29 = vector.extract_strided_slice %27 {offsets = [0, 0], sizes = [2, 32], strides = [1, 1]} : vector<2x128xf32> to vector<2x32xf32>
    %30 = vector.extract_strided_slice %27 {offsets = [0, 32], sizes = [2, 32], strides = [1, 1]} : vector<2x128xf32> to vector<2x32xf32>
    %31 = vector.extract_strided_slice %28 {offsets = [0, 64], sizes = [2, 32], strides = [1, 1]} : vector<2x128xf32> to vector<2x32xf32>
    %32 = vector.extract_strided_slice %27 {offsets = [0, 96], sizes = [2, 32], strides = [1, 1]} : vector<2x128xf32> to vector<2x32xf32>
    %c0_24 = arith.constant 0 : index
    %c0_25 = arith.constant 0 : index
    %c0_26 = arith.constant 0 : index
    %33 = vector.load %arg2[%c0_24, %c0_25, %c0_26] : memref<2x2x32xf32, #tpu.memory_space<vmem>>, vector<1x2x32xf32>
    %34 = vector.shape_cast %33 : vector<1x2x32xf32> to vector<2x32xf32>
    %35 = arith.mulf %30, %34 : vector<2x32xf32>
    %36 = arith.mulf %29, %31 : vector<2x32xf32>
    %37 = arith.addf %35, %36 : vector<2x32xf32>
    %38 = math.tanh %37 : vector<2x32xf32>
    %39 = arith.mulf %32, %38 : vector<2x32xf32>
    %c0_27 = arith.constant 0 : index
    %c0_28 = arith.constant 0 : index
    %c0_29 = arith.constant 0 : index
    %40 = vector.load %arg9[%c0_27, %c0_28, %c0_29] : memref<2x2x32xf32, #tpu.memory_space<vmem>>, vector<1x2x32xf32>
    %41 = vector.shape_cast %40 : vector<1x2x32xf32> to vector<2x32xf32>
    %42 = vector.shape_cast %39 : vector<2x32xf32> to vector<1x2x32xf32>
    tpu.vector_store %arg9[%c0_27, %c0_28, %c0_29], %42 {strides = array<i32>} : memref<2x2x32xf32, #tpu.memory_space<vmem>>, vector<1x2x32xf32>,
    %c0_30 = arith.constant 0 : index
    %c0_31 = arith.constant 0 : index
    %c0_32 = arith.constant 0 : index
    %43 = vector.load %arg10[%c0_30, %c0_31, %c0_32] : memref<2x2x32xf32, #tpu.memory_space<vmem>>, vector<1x2x32xf32>
    %44 = vector.shape_cast %43 : vector<1x2x32xf32> to vector<2x32xf32>
    %45 = vector.shape_cast %37 : vector<2x32xf32> to vector<1x2x32xf32>
    tpu.vector_store %arg10[%c0_30, %c0_31, %c0_32], %45 {strides = array<i32>} : memref<2x2x32xf32, #tpu.memory_space<vmem>>, vector<1x2x32xf32>,
    %c1_33 = arith.constant 1 : index
    %c0_34 = arith.constant 0 : index
    %c0_35 = arith.constant 0 : index
    %46 = vector.load %arg3[%c1_33, %c0_34, %c0_35] : memref<2x32x128xf32, #tpu.memory_space<vmem>>, vector<1x32x128xf32>
    %47 = vector.shape_cast %46 : vector<1x32x128xf32> to vector<32x128xf32>
    %cst_36 = arith.constant dense<0.000000e+00> : vector<2x128xf32>
    %48 = tpu.matmul %39, %47, %cst_36 {dimension_numbers = #tpu.dot_dimension_numbers<[1], [0], [0], [1], [0, 0, 1, 1], [], []>} : vector<2x32xf32>, vector<32x128xf32>, vector<2x128xf32> -> vector<2x128xf32>
    %49 = arith.addf %48, %18 : vector<2x128xf32>
    %50 = arith.negf %49 : vector<2x128xf32>
    %51 = math.exp %50 : vector<2x128xf32>
    %cst_37 = arith.constant 1.000000e+00 : f32
    %52 = vector.broadcast %cst_37 : f32 to vector<2x128xf32>
    %53 = arith.addf %52, %51 : vector<2x128xf32>
    %54 = arith.divf %52, %53 : vector<2x128xf32>
    %55 = math.tanh %49 : vector<2x128xf32>
    %56 = vector.extract_strided_slice %54 {offsets = [0, 0], sizes = [2, 32], strides = [1, 1]} : vector<2x128xf32> to vector<2x32xf32>
    %57 = vector.extract_strided_slice %54 {offsets = [0, 32], sizes = [2, 32], strides = [1, 1]} : vector<2x128xf32> to vector<2x32xf32>
    %58 = vector.extract_strided_slice %55 {offsets = [0, 64], sizes = [2, 32], strides = [1, 1]} : vector<2x128xf32> to vector<2x32xf32>
    %59 = vector.extract_strided_slice %54 {offsets = [0, 96], sizes = [2, 32], strides = [1, 1]} : vector<2x128xf32> to vector<2x32xf32>
    %c1_38 = arith.constant 1 : index
    %c0_39 = arith.constant 0 : index
    %c0_40 = arith.constant 0 : index
    %60 = vector.load %arg2[%c1_38, %c0_39, %c0_40] : memref<2x2x32xf32, #tpu.memory_space<vmem>>, vector<1x2x32xf32>
    %61 = vector.shape_cast %60 : vector<1x2x32xf32> to vector<2x32xf32>
    %62 = arith.mulf %57, %61 : vector<2x32xf32>
    %63 = arith.mulf %56, %58 : vector<2x32xf32>
    %64 = arith.addf %62, %63 : vector<2x32xf32>
    %65 = math.tanh %64 : vector<2x32xf32>
    %66 = arith.mulf %59, %65 : vector<2x32xf32>
    %c1_41 = arith.constant 1 : index
    %c0_42 = arith.constant 0 : index
    %c0_43 = arith.constant 0 : index
    %67 = vector.load %arg9[%c1_41, %c0_42, %c0_43] : memref<2x2x32xf32, #tpu.memory_space<vmem>>, vector<1x2x32xf32>
    %68 = vector.shape_cast %67 : vector<1x2x32xf32> to vector<2x32xf32>
    %69 = vector.shape_cast %66 : vector<2x32xf32> to vector<1x2x32xf32>
    tpu.vector_store %arg9[%c1_41, %c0_42, %c0_43], %69 {strides = array<i32>} : memref<2x2x32xf32, #tpu.memory_space<vmem>>, vector<1x2x32xf32>,
    %c1_44 = arith.constant 1 : index
    %c0_45 = arith.constant 0 : index
    %c0_46 = arith.constant 0 : index
    %70 = vector.load %arg10[%c1_44, %c0_45, %c0_46] : memref<2x2x32xf32, #tpu.memory_space<vmem>>, vector<1x2x32xf32>
    %71 = vector.shape_cast %70 : vector<1x2x32xf32> to vector<2x32xf32>
    %72 = vector.shape_cast %64 : vector<2x32xf32> to vector<1x2x32xf32>
    tpu.vector_store %arg10[%c1_44, %c0_45, %c0_46], %72 {strides = array<i32>} : memref<2x2x32xf32, #tpu.memory_space<vmem>>, vector<1x2x32xf32>,
    %c0_47 = arith.constant 0 : index
    %c0_48 = arith.constant 0 : index
    %73 = vector.load %arg6[%c0_47, %c0_48] : memref<32x8xf32, #tpu.memory_space<vmem>>, vector<32x8xf32>
    %cst_49 = arith.constant dense<0.000000e+00> : vector<2x8xf32>
    %74 = tpu.matmul %66, %73, %cst_49 {dimension_numbers = #tpu.dot_dimension_numbers<[1], [0], [0], [1], [0, 0, 1, 1], [], []>} : vector<2x32xf32>, vector<32x8xf32>, vector<2x8xf32> -> vector<2x8xf32>
    %c0_50 = arith.constant 0 : index
    %c0_51 = arith.constant 0 : index
    %75 = vector.load %arg7[%c0_50, %c0_51] : memref<1x8xf32, #tpu.memory_space<vmem>>, vector<1x8xf32>
    %76 = vector.broadcast %75 : vector<1x8xf32> to vector<2x8xf32>
    %77 = arith.addf %74, %76 : vector<2x8xf32>
    %78 = arith.negf %77 : vector<2x8xf32>
    %79 = math.exp %78 : vector<2x8xf32>
    %cst_52 = arith.constant 1.000000e+00 : f32
    %80 = vector.broadcast %cst_52 : f32 to vector<2x8xf32>
    %81 = arith.addf %80, %79 : vector<2x8xf32>
    %82 = arith.divf %80, %81 : vector<2x8xf32>
    %c0_53 = arith.constant 0 : index
    %c0_54 = arith.constant 0 : index
    %83 = vector.load %arg8[%c0_53, %c0_54] : memref<2x8xf32, #tpu.memory_space<vmem>>, vector<2x8xf32>
    tpu.vector_store %arg8[%c0_53, %c0_54], %82 {strides = array<i32>} : memref<2x8xf32, #tpu.memory_space<vmem>>, vector<2x8xf32>,
    return
  }
}

</mosaic_0001>

<llo_original>
// kernel: lstm_forward_fused.1
$region0: #{lstm_forward_fused.1}
  #allocation0 [shape = 'u32[]', space=smem, size = 0x4, offset = 0x4, fixed_abs, tag = 'smem constant byte address 0x4 - core index']
  #allocation1 [shape = 'u32[144,128]{1,0:T(1,128)}', space=vmem, size = 0x12000, scoped, tag = 'internal scratch']
  %s0 = inlined_call_operand.vmem [shape: f32[2,8], index: 0, kind: input, shape index: {}]
  %s1 = inlined_call_operand.hbm [shape: f32[2,2,32], index: 1, kind: input, shape index: {}, may-alias: {1,9}]
  %s2 = inlined_call_operand.hbm [shape: f32[2,2,32], index: 2, kind: input, shape index: {}, may-alias: {2,10}]
  %s3 = inlined_call_operand.hbm [shape: f32[2,32,128], index: 3, kind: input, shape index: {}]
  %s4 = inlined_call_operand.hbm [shape: f32[2,32,128], index: 4, kind: input, shape index: {}]
  %s5 = inlined_call_operand.vmem [shape: f32[2,1,128], index: 5, kind: input, shape index: {}]
  %s6 = inlined_call_operand.vmem [shape: f32[32,8], index: 6, kind: input, shape index: {}]
  %s7 = inlined_call_operand.vmem [shape: f32[1,8], index: 7, kind: input, shape index: {}]
  %s8 = inlined_call_operand.hbm [shape: f32[2,8], index: 8, kind: output, shape index: {0}]
  %s9 = inlined_call_operand.hbm [shape: f32[2,2,32], index: 9, kind: output, shape index: {1}, may-alias: {1,9}]
  %s10 = inlined_call_operand.hbm [shape: f32[2,2,32], index: 10, kind: output, shape index: {2}, may-alias: {2,10}]
  %11 = xla_tuple %s8, %s9, %s10
  %s12 = sld [smem:[#allocation0]]
  $region74: #{lstm_forward_fused.1} parent=0
    _
  %s14 = ssub.s32 1, %s12
  %s15 = scalar_select 0, %s14, %s12
  $region1: #{lstm_forward_fused.1} parent=0
    #allocation2 [shape = 'u8[2048]{0}', space=vmem, size = 0x800, scoped, tag = 'input window, operand 1, single buffered']
    #allocation3 [shape = 's32[1]{0}', space=sflag, size = 0x4, scoped, tag = 'scoped memory for lstm_forward_fused.1']
    #allocation4 [shape = 's32[1]{0}', space=sflag, size = 0x4, scoped, tag = 'scoped memory for lstm_forward_fused.1']
    #allocation5 [shape = 'u8[2048]{0}', space=vmem, size = 0x800, scoped, tag = 'input window, operand 2, single buffered']
    #allocation6 [shape = 's32[1]{0}', space=sflag, size = 0x4, scoped, tag = 'scoped memory for lstm_forward_fused.1']
    #allocation7 [shape = 'u8[32768]{0}', space=vmem, size = 0x8000, scoped, tag = 'input window, operand 3, single buffered']
    #allocation8 [shape = 'u8[32768]{0}', space=vmem, size = 0x8000, scoped, tag = 'input window, operand 4, single buffered']
    #allocation9 [shape = 's32[1]{0}', space=sflag, size = 0x4, scoped, tag = 'scoped memory for lstm_forward_fused.1']
    #allocation10 [shape = 'u8[1024]{0}', space=vmem, size = 0x400, scoped, tag = 'output window, operand 0, single buffered']
    #allocation11 [shape = 'u8[2048]{0}', space=vmem, size = 0x800, scoped, tag = 'output window, operand 1, single buffered']
    #allocation12 [shape = 's32[1]{0}', space=sflag, size = 0x4, scoped, tag = 'scoped memory for lstm_forward_fused.1']
    #allocation13 [shape = 'u8[2048]{0}', space=vmem, size = 0x800, scoped, tag = 'output window, operand 2, single buffered']
    %16 = vsyncpa [#allocation3], 0
    %17 = vsyncpa [#allocation6], 0
    %18 = vsyncpa [#allocation9], 0
    %19 = vsyncpa [#allocation4], 0
    %20 = vsyncpa [#allocation12], 0
    // Predicated region
    $region2: #{lstm_forward_fused.1} parent=1 // pred_check
      _
    $region3: #{lstm_forward_fused.1} parent=1 // pred_check_branch
      %22 = sbr.rel (0) target = $region5
    $region4: #{lstm_forward_fused.1} parent=1 // pred_region
      _
    $region5: #{lstm_forward_fused.1} parent=1 // pred_fallthru
      _
    // Predicated region
    $region6: #{lstm_forward_fused.1} parent=1 // pred_check
      _
    $region7: #{lstm_forward_fused.1} parent=1 // pred_check_branch
      %24 = sbr.rel (0) target = $region9
    $region8: #{lstm_forward_fused.1} parent=1 // pred_region
      %s26 = ssub.s32 64, 64
      %27 = vsyncadd [#allocation3], %s26
      %s28 = sshll.u32 [#allocation2], 4
      %s29 = int_to_ptr.vmem [resolvable:$true] %s28
      %34 = dma.hbm_to_vmem [thread:$0]  %s1, 64, %s29, [#allocation3], 32, 32, 2
    $region9: #{lstm_forward_fused.1} parent=1 // pred_fallthru
      _
    // Predicated region
    $region10: #{lstm_forward_fused.1} parent=1 // pred_check
      _
    $region11: #{lstm_forward_fused.1} parent=1 // pred_check_branch
      %36 = sbr.rel (0) target = $region13
    $region12: #{lstm_forward_fused.1} parent=1 // pred_region
      %s38 = ssub.s32 64, 64
      %39 = vsyncadd [#allocation6], %s38
      %s40 = sshll.u32 [#allocation5], 4
      %s41 = int_to_ptr.vmem [resolvable:$true] %s40
      %46 = dma.hbm_to_vmem [thread:$0]  %s2, 64, %s41, [#allocation6], 32, 32, 2
    $region13: #{lstm_forward_fused.1} parent=1 // pred_fallthru
      _
    // Predicated region
    $region14: #{lstm_forward_fused.1} parent=1 // pred_check
      _
    $region15: #{lstm_forward_fused.1} parent=1 // pred_check_branch
      %48 = sbr.rel (0) target = $region17
    $region16: #{lstm_forward_fused.1} parent=1 // pred_region
      %s50 = ssub.s32 1024, 1024
      %51 = vsyncadd [#allocation6], %s50
      %s52 = sshll.u32 [#allocation7], 4
      %s53 = int_to_ptr.vmem [resolvable:$true] %s52
      %58 = dma.hbm_to_vmem [thread:$0]  %s3, 1024, %s53, [#allocation6], 128, 128, 8
    $region17: #{lstm_forward_fused.1} parent=1 // pred_fallthru
      _
    // Predicated region
    $region18: #{lstm_forward_fused.1} parent=1 // pred_check
      _
    $region19: #{lstm_forward_fused.1} parent=1 // pred_check_branch
      %60 = sbr.rel (0) target = $region21
    $region20: #{lstm_forward_fused.1} parent=1 // pred_region
      %s62 = ssub.s32 1024, 1024
      %63 = vsyncadd [#allocation9], %s62
      %s64 = sshll.u32 [#allocation8], 4
      %s65 = int_to_ptr.vmem [resolvable:$true] %s64
      %70 = dma.hbm_to_vmem [thread:$0]  %s4, 1024, %s65, [#allocation9], 128, 128, 8
    $region21: #{lstm_forward_fused.1} parent=1 // pred_fallthru
      _
    // Predicated region
    $region22: #{lstm_forward_fused.1} parent=1 // pred_check
      _
    $region23: #{lstm_forward_fused.1} parent=1 // pred_check_branch
      %72 = sbr.rel (0) target = $region25
    $region24: #{lstm_forward_fused.1} parent=1 // pred_region
      _
    $region25: #{lstm_forward_fused.1} parent=1 // pred_fallthru
      _
    // Predicated region
    $region26: #{lstm_forward_fused.1} parent=1 // pred_check
      _
    $region27: #{lstm_forward_fused.1} parent=1 // pred_check_branch
      %74 = sbr.rel (0) target = $region29
    $region28: #{lstm_forward_fused.1} parent=1 // pred_region
      _
    $region29: #{lstm_forward_fused.1} parent=1 // pred_fallthru
      _
    // Predicated region
    $region30: #{lstm_forward_fused.1} parent=1 // pred_check
      _
    $region31: #{lstm_forward_fused.1} parent=1 // pred_check_branch
      %76 = sbr.rel (0) target = $region33
    $region32: #{lstm_forward_fused.1} parent=1 // pred_region
      _
    $region33: #{lstm_forward_fused.1} parent=1 // pred_fallthru
      _
    // Predicated region
    $region34: #{lstm_forward_fused.1} parent=1 // pred_check
      _
    $region35: #{lstm_forward_fused.1} parent=1 // pred_check_branch
      %78 = sbr.rel (0) target = $region37
    $region36: #{lstm_forward_fused.1} parent=1 // pred_region
      %79 = dma.done [#allocation3], 64
    $region37: #{lstm_forward_fused.1} parent=1 // pred_fallthru
      _
    // Predicated region
    $region38: #{lstm_forward_fused.1} parent=1 // pred_check
      _
    $region39: #{lstm_forward_fused.1} parent=1 // pred_check_branch
      %81 = sbr.rel (0) target = $region41
    $region40: #{lstm_forward_fused.1} parent=1 // pred_region
      %82 = dma.done [#allocation6], 64
    $region41: #{lstm_forward_fused.1} parent=1 // pred_fallthru
      _
    // Predicated region
    $region42: #{lstm_forward_fused.1} parent=1 // pred_check
      _
    $region43: #{lstm_forward_fused.1} parent=1 // pred_check_branch
      %84 = sbr.rel (0) target = $region45
    $region44: #{lstm_forward_fused.1} parent=1 // pred_region
      %85 = dma.done [#allocation6], 1024
    $region45: #{lstm_forward_fused.1} parent=1 // pred_fallthru
      _
    // Predicated region
    $region46: #{lstm_forward_fused.1} parent=1 // pred_check
      _
    $region47: #{lstm_forward_fused.1} parent=1 // pred_check_branch
      %87 = sbr.rel (0) target = $region49
    $region48: #{lstm_forward_fused.1} parent=1 // pred_region
      %88 = dma.done [#allocation9], 1024
    $region49: #{lstm_forward_fused.1} parent=1 // pred_fallthru
      _
    %v89 = vld [vmem:[%s0] sm:$0x3]
    %v90 = vld [vmem:[#allocation2] sm:$0x3]
    %v91 = vld [vmem:[#allocation8] sm:$0xff]
    %v92 = vld [vmem:[#allocation8 + $0x8] sm:$0xff]
    %v93 = vld [vmem:[#allocation8 + $0x10] sm:$0xff]
    %v94 = vld [vmem:[#allocation8 + $0x18] sm:$0xff]
    %v95 = vld [vmem:[%s5] sm:$0x1]
    %v97 = vlaneseq
    %v98 = vshrl.u32 %v97, 7
    %v99 = vsub.s32 0, %v98
    %v100 = vrot.slane %v95, %v99
    %vm102 = vcmask 261120
    %v104 = vsel %vm102, %v90, 0
    %106 = vmatprep.subr.mxu0 0.0
    %107 = vmatpush1.msra.mxu0 0.0
    %108 = vmatprep.subr.mxu0 0.0
    %109 = vmatpush1.msra.mxu0 0.0
    %110 = vmatprep.subr.mxu0 0.0
    %111 = vmatpush1.msra.mxu0 0.0
    %112 = vmatprep.subr.mxu0 0.0
    %113 = vmatpush1.msra.mxu0 0.0
    %114 = vmatprep.subr.mxu0 0.0
    %115 = vmatpush1.msra.mxu0 0.0
    %116 = vmatprep.subr.mxu0 0.0
    %117 = vmatpush1.msra.mxu0 0.0
    %118 = vmatprep.subr.mxu0 0.0
    %119 = vmatpush1.msra.mxu0 0.0
    %120 = vmatprep.subr.mxu0 0.0
    %121 = vmatpush1.msra.mxu0 0.0
    %122 = vmatprep.subr.mxu0 0.0
    %123 = vmatpush1.msra.mxu0 0.0
    %124 = vmatprep.subr.mxu0 0.0
    %125 = vmatpush1.msra.mxu0 0.0
    %126 = vmatprep.subr.mxu0 0.0
    %127 = vmatpush1.msra.mxu0 0.0
    %128 = vmatprep.subr.mxu0 0.0
    %129 = vmatpush1.msra.mxu0 0.0
    %130 = vmatprep.subr.mxu0 0.0
    %131 = vmatpush1.msra.mxu0 %v94
    %132 = vmatprep.subr.mxu0 0.0
    %133 = vmatpush1.msra.mxu0 %v93
    %134 = vmatprep.subr.mxu0 0.0
    %135 = vmatpush1.msra.mxu0 %v92
    %136 = vmatprep.subr.mxu0 0.0
    %137 = vmatpush1.msra.mxu0 %v91
    %138 = vmatprep.subr.mxu0 0.0
    %139 = vmatpush2.msra.mxu0 0.0
    %140 = vmatprep.subr.mxu0 0.0
    %141 = vmatpush2.msra.mxu0 0.0
    %142 = vmatprep.subr.mxu0 0.0
    %143 = vmatpush2.msra.mxu0 0.0
    %144 = vmatprep.subr.mxu0 0.0
    %145 = vmatpush2.msra.mxu0 0.0
    %146 = vmatprep.subr.mxu0 0.0
    %147 = vmatpush2.msra.mxu0 0.0
    %148 = vmatprep.subr.mxu0 0.0
    %149 = vmatpush2.msra.mxu0 0.0
    %150 = vmatprep.subr.mxu0 0.0
    %151 = vmatpush2.msra.mxu0 0.0
    %152 = vmatprep.subr.mxu0 0.0
    %153 = vmatpush2.msra.mxu0 0.0
    %154 = vmatprep.subr.mxu0 0.0
    %155 = vmatpush2.msra.mxu0 0.0
    %156 = vmatprep.subr.mxu0 0.0
    %157 = vmatpush2.msra.mxu0 0.0
    %158 = vmatprep.subr.mxu0 0.0
    %159 = vmatpush2.msra.mxu0 0.0
    %160 = vmatprep.subr.mxu0 0.0
    %161 = vmatpush2.msra.mxu0 0.0
    %162 = vmatprep.subr.mxu0 0.0
    %163 = vmatpush2.msra.mxu0 0.0
    %164 = vmatprep.subr.mxu0 0.0
    %165 = vmatpush2.msra.mxu0 0.0
    %166 = vmatprep.subr.mxu0 0.0
    %167 = vmatpush2.msra.mxu0 0.0
    %168 = vmatprep.subr.mxu0 0.0
    %169 = vmatpush2.msra.mxu0 0.0
    %170 = vmatprep.mubr.f32.mxu0 0.0
    %171 = vmatmul.mubr.f32.gmra.mxu0 %v104
    %v172 = vpop.f32.mrf.mxu0
    %v173 = vadd.f32 %v100, %v172
    %v174 = vpop.f32.mrf.mxu0
    %175 = vdwg.mxu0
    %s176 = scalar_lea.vmem [#allocation2], 2
    %v177 = vld [vmem:[%s176] sm:$0x3]
    %s178 = scalar_lea.vmem [#allocation8], 32
    %v179 = vld [vmem:[%s178] sm:$0xff]
    %v180 = vld [vmem:[%s178 + $0x8] sm:$0xff]
    %v181 = vld [vmem:[%s178 + $0x10] sm:$0xff]
    %v182 = vld [vmem:[%s178 + $0x18] sm:$0xff]
    %s183 = scalar_lea.vmem %s5, 1
    %v184 = vld [vmem:[%s183] sm:$0x1]
    %v186 = vlaneseq
    %v187 = vshrl.u32 %v186, 7
    %v188 = vsub.s32 0, %v187
    %v189 = vrot.slane %v184, %v188
    %v192 = vsel %vm102, %v177, 0
    %194 = vmatprep.subr.mxu0 0.0
    %195 = vmatpush1.msra.mxu0 0.0
    %196 = vmatprep.subr.mxu0 0.0
    %197 = vmatpush1.msra.mxu0 0.0
    %198 = vmatprep.subr.mxu0 0.0
    %199 = vmatpush1.msra.mxu0 0.0
    %200 = vmatprep.subr.mxu0 0.0
    %201 = vmatpush1.msra.mxu0 0.0
    %202 = vmatprep.subr.mxu0 0.0
    %203 = vmatpush1.msra.mxu0 0.0
    %204 = vmatprep.subr.mxu0 0.0
    %205 = vmatpush1.msra.mxu0 0.0
    %206 = vmatprep.subr.mxu0 0.0
    %207 = vmatpush1.msra.mxu0 0.0
    %208 = vmatprep.subr.mxu0 0.0
    %209 = vmatpush1.msra.mxu0 0.0
    %210 = vmatprep.subr.mxu0 0.0
    %211 = vmatpush1.msra.mxu0 0.0
    %212 = vmatprep.subr.mxu0 0.0
    %213 = vmatpush1.msra.mxu0 0.0
    %214 = vmatprep.subr.mxu0 0.0
    %215 = vmatpush1.msra.mxu0 0.0
    %216 = vmatprep.subr.mxu0 0.0
    %217 = vmatpush1.msra.mxu0 0.0
    %218 = vmatprep.subr.mxu0 0.0
    %219 = vmatpush1.msra.mxu0 %v182
    %220 = vmatprep.subr.mxu0 0.0
    %221 = vmatpush1.msra.mxu0 %v181
    %222 = vmatprep.subr.mxu0 0.0
    %223 = vmatpush1.msra.mxu0 %v180
    %224 = vmatprep.subr.mxu0 0.0
    %225 = vmatpush1.msra.mxu0 %v179
    %226 = vmatprep.subr.mxu0 0.0
    %227 = vmatpush2.msra.mxu0 0.0
    %228 = vmatprep.subr.mxu0 0.0
    %229 = vmatpush2.msra.mxu0 0.0
    %230 = vmatprep.subr.mxu0 0.0
    %231 = vmatpush2.msra.mxu0 0.0
    %232 = vmatprep.subr.mxu0 0.0
    %233 = vmatpush2.msra.mxu0 0.0
    %234 = vmatprep.subr.mxu0 0.0
    %235 = vmatpush2.msra.mxu0 0.0
    %236 = vmatprep.subr.mxu0 0.0
    %237 = vmatpush2.msra.mxu0 0.0
    %238 = vmatprep.subr.mxu0 0.0
    %239 = vmatpush2.msra.mxu0 0.0
    %240 = vmatprep.subr.mxu0 0.0
    %241 = vmatpush2.msra.mxu0 0.0
    %242 = vmatprep.subr.mxu0 0.0
    %243 = vmatpush2.msra.mxu0 0.0
    %244 = vmatprep.subr.mxu0 0.0
    %245 = vmatpush2.msra.mxu0 0.0
    %246 = vmatprep.subr.mxu0 0.0
    %247 = vmatpush2.msra.mxu0 0.0
    %248 = vmatprep.subr.mxu0 0.0
    %249 = vmatpush2.msra.mxu0 0.0
    %250 = vmatprep.subr.mxu0 0.0
    %251 = vmatpush2.msra.mxu0 0.0
    %252 = vmatprep.subr.mxu0 0.0
    %253 = vmatpush2.msra.mxu0 0.0
    %254 = vmatprep.subr.mxu0 0.0
    %255 = vmatpush2.msra.mxu0 0.0
    %256 = vmatprep.subr.mxu0 0.0
    %257 = vmatpush2.msra.mxu0 0.0
    %258 = vmatprep.mubr.f32.mxu0 0.0
    %259 = vmatmul.mubr.f32.gmra.mxu0 %v192
    %v260 = vpop.f32.mrf.mxu0
    %v261 = vadd.f32 %v189, %v260
    %v262 = vpop.f32.mrf.mxu0
    %263 = vdwg.mxu0
    %v264 = vld [vmem:[#allocation7] sm:$0xff]
    %vm265 = vcmask 64512
    %v267 = vsel %vm265, %v89, 0
    %269 = vmatprep.subr.mxu0 0.0
    %270 = vmatpush1.msra.mxu0 0.0
    %271 = vmatprep.subr.mxu0 0.0
    %272 = vmatpush1.msra.mxu0 0.0
    %273 = vmatprep.subr.mxu0 0.0
    %274 = vmatpush1.msra.mxu0 0.0
    %275 = vmatprep.subr.mxu0 0.0
    %276 = vmatpush1.msra.mxu0 0.0
    %277 = vmatprep.subr.mxu0 0.0
    %278 = vmatpush1.msra.mxu0 0.0
    %279 = vmatprep.subr.mxu0 0.0
    %280 = vmatpush1.msra.mxu0 0.0
    %281 = vmatprep.subr.mxu0 0.0
    %282 = vmatpush1.msra.mxu0 0.0
    %283 = vmatprep.subr.mxu0 0.0
    %284 = vmatpush1.msra.mxu0 0.0
    %285 = vmatprep.subr.mxu0 0.0
    %286 = vmatpush1.msra.mxu0 0.0
    %287 = vmatprep.subr.mxu0 0.0
    %288 = vmatpush1.msra.mxu0 0.0
    %289 = vmatprep.subr.mxu0 0.0
    %290 = vmatpush1.msra.mxu0 0.0
    %291 = vmatprep.subr.mxu0 0.0
    %292 = vmatpush1.msra.mxu0 0.0
    %293 = vmatprep.subr.mxu0 0.0
    %294 = vmatpush1.msra.mxu0 0.0
    %295 = vmatprep.subr.mxu0 0.0
    %296 = vmatpush1.msra.mxu0 0.0
    %297 = vmatprep.subr.mxu0 0.0
    %298 = vmatpush1.msra.mxu0 0.0
    %299 = vmatprep.subr.mxu0 0.0
    %300 = vmatpush1.msra.mxu0 %v264
    %301 = vmatprep.subr.mxu0 0.0
    %302 = vmatpush2.msra.mxu0 0.0
    %303 = vmatprep.subr.mxu0 0.0
    %304 = vmatpush2.msra.mxu0 0.0
    %305 = vmatprep.subr.mxu0 0.0
    %306 = vmatpush2.msra.mxu0 0.0
    %307 = vmatprep.subr.mxu0 0.0
    %308 = vmatpush2.msra.mxu0 0.0
    %309 = vmatprep.subr.mxu0 0.0
    %310 = vmatpush2.msra.mxu0 0.0
    %311 = vmatprep.subr.mxu0 0.0
    %312 = vmatpush2.msra.mxu0 0.0
    %313 = vmatprep.subr.mxu0 0.0
    %314 = vmatpush2.msra.mxu0 0.0
    %315 = vmatprep.subr.mxu0 0.0
    %316 = vmatpush2.msra.mxu0 0.0
    %317 = vmatprep.subr.mxu0 0.0
    %318 = vmatpush2.msra.mxu0 0.0
    %319 = vmatprep.subr.mxu0 0.0
    %320 = vmatpush2.msra.mxu0 0.0
    %321 = vmatprep.subr.mxu0 0.0
    %322 = vmatpush2.msra.mxu0 0.0
    %323 = vmatprep.subr.mxu0 0.0
    %324 = vmatpush2.msra.mxu0 0.0
    %325 = vmatprep.subr.mxu0 0.0
    %326 = vmatpush2.msra.mxu0 0.0
    %327 = vmatprep.subr.mxu0 0.0
    %328 = vmatpush2.msra.mxu0 0.0
    %329 = vmatprep.subr.mxu0 0.0
    %330 = vmatpush2.msra.mxu0 0.0
    %331 = vmatprep.subr.mxu0 0.0
    %332 = vmatpush2.msra.mxu0 0.0
    %333 = vmatprep.mubr.f32.mxu0 0.0
    %334 = vmatmul.mubr.f32.gmra.mxu0 %v267
    %v335 = vpop.f32.mrf.mxu0
    %v336 = vadd.f32 %v173, %v335
    %v337 = vpop.f32.mrf.mxu0
    %338 = vdwg.mxu0
    %v339 = vxor.u32 %v336, 2147483648
    %v340 = vmul.f32 %v339, 1.442695
    %v341 = vpow.pop %v340
    %v342 = vadd.f32 %v341, 1.0
    %v343 = vrcp.pop %v342
    %v344 = vmul.f32 1.0, %v343
    %v345 = vtanh.pop %v336
    %v346 = vld [vmem:[#allocation5] sm:$0x3]
    %348 = vrot.lane.b32.xlu0 %v346, 32
    %v349 = vpop.permute.xlu0 %348
    %v351 = vmul.f32 %v344, %v349
    %353 = vrot.lane.b32.xlu0 %v345, 64
    %v354 = vpop.permute.xlu0 %353
    %v356 = vmul.f32 %v344, %v354
    %358 = vrot.lane.b32.xlu0 %v356, 32
    %v359 = vpop.permute.xlu0 %358
    %v361 = vadd.f32 %v351, %v359
    %v362 = vtanh.pop %v361
    %364 = vrot.lane.b32.xlu0 %v362, 64
    %v365 = vpop.permute.xlu0 %364
    %v367 = vmul.f32 %v344, %v365
    %369 = vrot.lane.b32.xlu0 %v367, 32
    %v370 = vpop.permute.xlu0 %369
    %vm372 = vcmask 254976
    %373 = vst.msk [vmem:[#allocation11] sm:$0x3] %vm372, %v370
    %375 = vrot.lane.b32.xlu0 %v361, 96
    %v376 = vpop.permute.xlu0 %375
    %378 = vst.msk [vmem:[#allocation13] sm:$0x3] %vm372, %v376
    %s379 = scalar_lea.vmem [#allocation7], 32
    %v380 = vld [vmem:[%s379] sm:$0xff]
    %v381 = vld [vmem:[%s379 + $0x8] sm:$0xff]
    %v382 = vld [vmem:[%s379 + $0x10] sm:$0xff]
    %v383 = vld [vmem:[%s379 + $0x18] sm:$0xff]
    %v384 = vsel %vm102, %v370, 0
    %386 = vmatprep.subr.mxu0 0.0
    %387 = vmatpush1.msra.mxu0 0.0
    %388 = vmatprep.subr.mxu0 0.0
    %389 = vmatpush1.msra.mxu0 0.0
    %390 = vmatprep.subr.mxu0 0.0
    %391 = vmatpush1.msra.mxu0 0.0
    %392 = vmatprep.subr.mxu0 0.0
    %393 = vmatpush1.msra.mxu0 0.0
    %394 = vmatprep.subr.mxu0 0.0
    %395 = vmatpush1.msra.mxu0 0.0
    %396 = vmatprep.subr.mxu0 0.0
    %397 = vmatpush1.msra.mxu0 0.0
    %398 = vmatprep.subr.mxu0 0.0
    %399 = vmatpush1.msra.mxu0 0.0
    %400 = vmatprep.subr.mxu0 0.0
    %401 = vmatpush1.msra.mxu0 0.0
    %402 = vmatprep.subr.mxu0 0.0
    %403 = vmatpush1.msra.mxu0 0.0
    %404 = vmatprep.subr.mxu0 0.0
    %405 = vmatpush1.msra.mxu0 0.0
    %406 = vmatprep.subr.mxu0 0.0
    %407 = vmatpush1.msra.mxu0 0.0
    %408 = vmatprep.subr.mxu0 0.0
    %409 = vmatpush1.msra.mxu0 0.0
    %410 = vmatprep.subr.mxu0 0.0
    %411 = vmatpush1.msra.mxu0 %v383
    %412 = vmatprep.subr.mxu0 0.0
    %413 = vmatpush1.msra.mxu0 %v382
    %414 = vmatprep.subr.mxu0 0.0
    %415 = vmatpush1.msra.mxu0 %v381
    %416 = vmatprep.subr.mxu0 0.0
    %417 = vmatpush1.msra.mxu0 %v380
    %418 = vmatprep.subr.mxu0 0.0
    %419 = vmatpush2.msra.mxu0 0.0
    %420 = vmatprep.subr.mxu0 0.0
    %421 = vmatpush2.msra.mxu0 0.0
    %422 = vmatprep.subr.mxu0 0.0
    %423 = vmatpush2.msra.mxu0 0.0
    %424 = vmatprep.subr.mxu0 0.0
    %425 = vmatpush2.msra.mxu0 0.0
    %426 = vmatprep.subr.mxu0 0.0
    %427 = vmatpush2.msra.mxu0 0.0
    %428 = vmatprep.subr.mxu0 0.0
    %429 = vmatpush2.msra.mxu0 0.0
    %430 = vmatprep.subr.mxu0 0.0
    %431 = vmatpush2.msra.mxu0 0.0
    %432 = vmatprep.subr.mxu0 0.0
    %433 = vmatpush2.msra.mxu0 0.0
    %434 = vmatprep.subr.mxu0 0.0
    %435 = vmatpush2.msra.mxu0 0.0
    %436 = vmatprep.subr.mxu0 0.0
    %437 = vmatpush2.msra.mxu0 0.0
    %438 = vmatprep.subr.mxu0 0.0
    %439 = vmatpush2.msra.mxu0 0.0
    %440 = vmatprep.subr.mxu0 0.0
    %441 = vmatpush2.msra.mxu0 0.0
    %442 = vmatprep.subr.mxu0 0.0
    %443 = vmatpush2.msra.mxu0 0.0
    %444 = vmatprep.subr.mxu0 0.0
    %445 = vmatpush2.msra.mxu0 0.0
    %446 = vmatprep.subr.mxu0 0.0
    %447 = vmatpush2.msra.mxu0 0.0
    %448 = vmatprep.subr.mxu0 0.0
    %449 = vmatpush2.msra.mxu0 0.0
    %450 = vmatprep.mubr.f32.mxu0 0.0
    %451 = vmatmul.mubr.f32.gmra.mxu0 %v384
    %v452 = vpop.f32.mrf.mxu0
    %v453 = vadd.f32 %v261, %v452
    %v454 = vpop.f32.mrf.mxu0
    %455 = vdwg.mxu0
    %v456 = vxor.u32 %v453, 2147483648
    %v457 = vmul.f32 %v456, 1.442695
    %v458 = vpow.pop %v457
    %v459 = vadd.f32 %v458, 1.0
    %v460 = vrcp.pop %v459
    %v461 = vmul.f32 1.0, %v460
    %v462 = vtanh.pop %v453
    %s463 = scalar_lea.vmem [#allocation5], 2
    %v464 = vld [vmem:[%s463] sm:$0x3]
    %466 = vrot.lane.b32.xlu0 %v464, 32
    %v467 = vpop.permute.xlu0 %466
    %v469 = vmul.f32 %v461, %v467
    %471 = vrot.lane.b32.xlu0 %v462, 64
    %v472 = vpop.permute.xlu0 %471
    %v474 = vmul.f32 %v461, %v472
    %476 = vrot.lane.b32.xlu0 %v474, 32
    %v477 = vpop.permute.xlu0 %476
    %v479 = vadd.f32 %v469, %v477
    %v480 = vtanh.pop %v479
    %482 = vrot.lane.b32.xlu0 %v480, 64
    %v483 = vpop.permute.xlu0 %482
    %v485 = vmul.f32 %v461, %v483
    %487 = vrot.lane.b32.xlu0 %v485, 32
    %v488 = vpop.permute.xlu0 %487
    %s490 = scalar_lea.vmem [#allocation11], 2
    %491 = vst.msk [vmem:[%s490] sm:$0x3] %vm372, %v488
    %493 = vrot.lane.b32.xlu0 %v479, 96
    %v494 = vpop.permute.xlu0 %493
    %s496 = scalar_lea.vmem [#allocation13], 2
    %497 = vst.msk [vmem:[%s496] sm:$0x3] %vm372, %v494
    %v498 = vld [vmem:[%s6] sm:$0xff]
    %v499 = vld [vmem:[%s6 + $0x8] sm:$0xff]
    %v500 = vld [vmem:[%s6 + $0x10] sm:$0xff]
    %v501 = vld [vmem:[%s6 + $0x18] sm:$0xff]
    %v502 = vld [vmem:[%s7] sm:$0x1]
    %v504 = vlaneseq
    %v505 = vshrl.u32 %v504, 7
    %v506 = vsub.s32 0, %v505
    %v507 = vrot.slane %v502, %v506
    %v509 = vsel %vm102, %v488, 0
    %511 = vmatprep.subr.mxu0 0.0
    %512 = vmatpush1.msra.mxu0 0.0
    %513 = vmatprep.subr.mxu0 0.0
    %514 = vmatpush1.msra.mxu0 0.0
    %515 = vmatprep.subr.mxu0 0.0
    %516 = vmatpush1.msra.mxu0 0.0
    %517 = vmatprep.subr.mxu0 0.0
    %518 = vmatpush1.msra.mxu0 0.0
    %519 = vmatprep.subr.mxu0 0.0
    %520 = vmatpush1.msra.mxu0 0.0
    %521 = vmatprep.subr.mxu0 0.0
    %522 = vmatpush1.msra.mxu0 0.0
    %523 = vmatprep.subr.mxu0 0.0
    %524 = vmatpush1.msra.mxu0 0.0
    %525 = vmatprep.subr.mxu0 0.0
    %526 = vmatpush1.msra.mxu0 0.0
    %527 = vmatprep.subr.mxu0 0.0
    %528 = vmatpush1.msra.mxu0 0.0
    %529 = vmatprep.subr.mxu0 0.0
    %530 = vmatpush1.msra.mxu0 0.0
    %531 = vmatprep.subr.mxu0 0.0
    %532 = vmatpush1.msra.mxu0 0.0
    %533 = vmatprep.subr.mxu0 0.0
    %534 = vmatpush1.msra.mxu0 0.0
    %535 = vmatprep.subr.mxu0 0.0
    %536 = vmatpush1.msra.mxu0 %v501
    %537 = vmatprep.subr.mxu0 0.0
    %538 = vmatpush1.msra.mxu0 %v500
    %539 = vmatprep.subr.mxu0 0.0
    %540 = vmatpush1.msra.mxu0 %v499
    %541 = vmatprep.subr.mxu0 0.0
    %542 = vmatpush1.msra.mxu0 %v498
    %543 = vmatprep.subr.mxu0 0.0
    %544 = vmatpush2.msra.mxu0 0.0
    %545 = vmatprep.subr.mxu0 0.0
    %546 = vmatpush2.msra.mxu0 0.0
    %547 = vmatprep.subr.mxu0 0.0
    %548 = vmatpush2.msra.mxu0 0.0
    %549 = vmatprep.subr.mxu0 0.0
    %550 = vmatpush2.msra.mxu0 0.0
    %551 = vmatprep.subr.mxu0 0.0
    %552 = vmatpush2.msra.mxu0 0.0
    %553 = vmatprep.subr.mxu0 0.0
    %554 = vmatpush2.msra.mxu0 0.0
    %555 = vmatprep.subr.mxu0 0.0
    %556 = vmatpush2.msra.mxu0 0.0
    %557 = vmatprep.subr.mxu0 0.0
    %558 = vmatpush2.msra.mxu0 0.0
    %559 = vmatprep.subr.mxu0 0.0
    %560 = vmatpush2.msra.mxu0 0.0
    %561 = vmatprep.subr.mxu0 0.0
    %562 = vmatpush2.msra.mxu0 0.0
    %563 = vmatprep.subr.mxu0 0.0
    %564 = vmatpush2.msra.mxu0 0.0
    %565 = vmatprep.subr.mxu0 0.0
    %566 = vmatpush2.msra.mxu0 0.0
    %567 = vmatprep.subr.mxu0 0.0
    %568 = vmatpush2.msra.mxu0 0.0
    %569 = vmatprep.subr.mxu0 0.0
    %570 = vmatpush2.msra.mxu0 0.0
    %571 = vmatprep.subr.mxu0 0.0
    %572 = vmatpush2.msra.mxu0 0.0
    %573 = vmatprep.subr.mxu0 0.0
    %574 = vmatpush2.msra.mxu0 0.0
    %575 = vmatprep.mubr.f32.mxu0 0.0
    %576 = vmatmul.mubr.f32.gmra.mxu0 %v509
    %v577 = vpop.f32.mrf.mxu0
    %v578 = vadd.f32 %v507, %v577
    %v579 = vpop.f32.mrf.mxu0
    %580 = vdwg.mxu0
    %v581 = vxor.u32 %v578, 2147483648
    %v582 = vmul.f32 %v581, 1.442695
    %v583 = vpow.pop %v582
    %v584 = vadd.f32 %v583, 1.0
    %v585 = vrcp.pop %v584
    %v586 = vmul.f32 1.0, %v585
    %vm587 = vcmask 58368
    %588 = vst.msk [vmem:[#allocation10] sm:$0x3] %vm587, %v586
    // Predicated region
    $region50: #{lstm_forward_fused.1} parent=1 // pred_check
      _
    $region51: #{lstm_forward_fused.1} parent=1 // pred_check_branch
      %590 = sbr.rel (0) target = $region53
    $region52: #{lstm_forward_fused.1} parent=1 // pred_region
      %s592 = ssub.s32 32, 32
      %593 = vsyncadd [#allocation4], %s592
      %s595 = sshll.u32 [#allocation10], 4
      %s596 = int_to_ptr.vmem [resolvable:$true] %s595
      %598 = dma.vmem_to_hbm [thread:$0]  %s596, 32, %s8, [#allocation4]
    $region53: #{lstm_forward_fused.1} parent=1 // pred_fallthru
      _
    // Predicated region
    $region54: #{lstm_forward_fused.1} parent=1 // pred_check
      _
    $region55: #{lstm_forward_fused.1} parent=1 // pred_check_branch
      %600 = sbr.rel (0) target = $region57
    $region56: #{lstm_forward_fused.1} parent=1 // pred_region
      %s602 = ssub.s32 64, 64
      %603 = vsyncadd [#allocation12], %s602
      %s604 = sshll.u32 [#allocation11], 4
      %s605 = int_to_ptr.vmem [resolvable:$true] %s604
      %610 = dma.vmem_to_hbm [thread:$0]  %s605, 64, %s9, [#allocation12], 32, 32, 2
    $region57: #{lstm_forward_fused.1} parent=1 // pred_fallthru
      _
    // Predicated region
    $region58: #{lstm_forward_fused.1} parent=1 // pred_check
      _
    $region59: #{lstm_forward_fused.1} parent=1 // pred_check_branch
      %612 = sbr.rel (0) target = $region61
    $region60: #{lstm_forward_fused.1} parent=1 // pred_region
      %s614 = ssub.s32 64, 64
      %615 = vsyncadd [#allocation12], %s614
      %s616 = sshll.u32 [#allocation13], 4
      %s617 = int_to_ptr.vmem [resolvable:$true] %s616
      %622 = dma.vmem_to_hbm [thread:$0]  %s617, 64, %s10, [#allocation12], 32, 32, 2
    $region61: #{lstm_forward_fused.1} parent=1 // pred_fallthru
      _
    // Predicated region
    $region62: #{lstm_forward_fused.1} parent=1 // pred_check
      _
    $region63: #{lstm_forward_fused.1} parent=1 // pred_check_branch
      %624 = sbr.rel (0) target = $region65
    $region64: #{lstm_forward_fused.1} parent=1 // pred_region
      %625 = dma.done [#allocation4], 32
    $region65: #{lstm_forward_fused.1} parent=1 // pred_fallthru
      _
    // Predicated region
    $region66: #{lstm_forward_fused.1} parent=1 // pred_check
      _
    $region67: #{lstm_forward_fused.1} parent=1 // pred_check_branch
      %627 = sbr.rel (0) target = $region69
    $region68: #{lstm_forward_fused.1} parent=1 // pred_region
      %628 = dma.done [#allocation12], 64
    $region69: #{lstm_forward_fused.1} parent=1 // pred_fallthru
      _
    // Predicated region
    $region70: #{lstm_forward_fused.1} parent=1 // pred_check
      _
    $region71: #{lstm_forward_fused.1} parent=1 // pred_check_branch
      %630 = sbr.rel (0) target = $region73
    $region72: #{lstm_forward_fused.1} parent=1 // pred_region
      %631 = dma.done [#allocation12], 64
    $region73: #{lstm_forward_fused.1} parent=1 // pred_fallthru
      _
    %632 = vsyncpa [#allocation3], 1
    %633 = vsyncpa [#allocation6], 1
    %634 = vsyncpa [#allocation9], 1
    %635 = vsyncpa [#allocation4], 1
    %636 = vsyncpa [#allocation12], 1

</llo_original>
